<compile_context>
chip_gen: v7x
topology: tpu7x:2x2x1
jax: 0.10.0
libtpu: 0.0.40
codegen_flags: <defaults>
</compile_context>

<pallas_src>
import jax
import jax.numpy as jnp
import numpy as np
from jax.experimental import pallas as pl
from jax.experimental.pallas import tpu as pltpu

EPS = 1e-5
LANES = 128  # everything is padded to one 128-lane vreg width


def muxout_kernel(x_ref, w_ref, v_ref, out_ref):
    # v_ref rows: 0=b_in 1=g_in 2=be_in 3=b_br 4=g_br 5=be_br 6=b_out
    inv_b = 1.0 / x_ref.shape[0]

    def bn(h, g, be):
        # Training-mode BatchNorm1d, single-pass stats + fused affine:
        #   scale = gamma * rsqrt(var + eps); shift = beta - mean * scale
        s = jnp.sum(h, axis=0, keepdims=True)
        ss = jnp.sum(h * h, axis=0, keepdims=True)
        mean = s * inv_b
        var = ss * inv_b - mean * mean          # biased batch variance
        scale = g * jax.lax.rsqrt(var + EPS)
        shift = be - mean * scale
        return h * scale + shift

    x = x_ref[...]          # [B, 128]  (lanes >= D_IN are zero)
    v = v_ref[...]          # [7, 128]

    # linear_in: Linear + ReLU + BN (zero-padded columns stay exactly 0)
    h = jnp.maximum(
        jnp.dot(x, w_ref[0], preferred_element_type=jnp.float32) + v[0:1], 0.0)
    h = bn(h, v[1:2], v[2:3])

    # both branch hidden layers in ONE lane-concatenated matmul
    h = jnp.maximum(
        jnp.dot(h, w_ref[1], preferred_element_type=jnp.float32) + v[3:4], 0.0)
    h = bn(h, v[4:5], v[5:6])

    # both output heads in ONE block-diagonal matmul (last=True -> plain Linear)
    out_ref[...] = (
        jnp.dot(h, w_ref[2], preferred_element_type=jnp.float32) + v[6:7])


def muxout_forward(x, w_slab, v_slab, o1, o2):
    """Fused MuxOut forward. Single grid point; everything lives in VMEM."""
    B, d_in = x.shape
    x_pad = jnp.pad(x, ((0, 0), (0, LANES - d_in)))  # lane-dense kernel input
    y = pl.pallas_call(
        muxout_kernel,
        out_shape=jax.ShapeDtypeStruct((B, LANES), jnp.float32),
        in_specs=[pl.BlockSpec(memory_space=pltpu.MemorySpace.VMEM)] * 3,
        out_specs=pl.BlockSpec(memory_space=pltpu.MemorySpace.VMEM),
    )(x_pad, w_slab, v_slab)
    return y[:, :o1], y[:, o1:o1 + o2]


# ---------------------------------------------------------------------------
# Parameter construction / packing (one-time host-side work).
# ---------------------------------------------------------------------------
def _init_linear(key, in_dim, out_dim):
    # PyTorch-like uniform(-1/sqrt(fan_in), 1/sqrt(fan_in)); stored as [in, out].
    kw, kb = jax.random.split(key)
    bound = 1.0 / np.sqrt(in_dim)
    w = jax.random.uniform(kw, (in_dim, out_dim), jnp.float32, -bound, bound)
    b = jax.random.uniform(kb, (out_dim,), jnp.float32, -bound, bound)
    return w, b


def make_raw_params(key, d_in, h_in, h1, h2, o1, o2):
    ks = jax.random.split(key, 11)
    w_in, b_in = _init_linear(ks[0], d_in, h_in)
    w_b1, b_b1 = _init_linear(ks[1], h_in, h1)
    w_b2, b_b2 = _init_linear(ks[2], h_in, h2)
    w_o1, bo1 = _init_linear(ks[3], h1, o1)
    w_o2, bo2 = _init_linear(ks[4], h2, o2)
    # Non-trivial gamma/beta for better test coverage (fresh PyTorch BN would
    # use gamma=1, beta=0; the kernel is correct for arbitrary values).
    gamma = lambda k, n: jax.random.uniform(k, (n,), jnp.float32, 0.5, 1.5)
    beta = lambda k, n: 0.1 * jax.random.normal(k, (n,), jnp.float32)
    return dict(
        w_in=w_in, b_in=b_in, g_in=gamma(ks[5], h_in), be_in=beta(ks[6], h_in),
        w_b1=w_b1, b_b1=b_b1, g_b1=gamma(ks[7], h1), be_b1=beta(ks[8], h1),
        w_b2=w_b2, b_b2=b_b2, g_b2=gamma(ks[9], h2), be_b2=beta(ks[10], h2),
        w_o1=w_o1, bo1=bo1, w_o2=w_o2, bo2=bo2,
    )


def pack_params(p, h1, h2, o1, o2):
    """Pack all weights into one [3,128,128] slab and all vectors into [7,128]."""
    def pad2(w):
        out = np.zeros((LANES, LANES), np.float32)
        w = np.asarray(w)
        out[:w.shape[0], :w.shape[1]] = w
        return out

    w_in = pad2(p["w_in"])
    # Lane-concatenate the two branch hidden layers: [H_IN, H1+H2].
    w_br = pad2(np.concatenate([np.asarray(p["w_b1"]), np.asarray(p["w_b2"])], axis=1))
    # Block-diagonal head weights: concat(h1,h2) @ W_out == (y1 | y2).
    w_out = np.zeros((LANES, LANES), np.float32)
    w_out[:h1, :o1] = np.asarray(p["w_o1"])
    w_out[h1:h1 + h2, o1:o1 + o2] = np.asarray(p["w_o2"])
    w_slab = jnp.asarray(np.stack([w_in, w_br, w_out], axis=0))

    def padv(v, fill=0.0):
        out = np.full((LANES,), fill, np.float32)
        v = np.asarray(v).reshape(-1)
        out[:v.shape[0]] = v
        return out

    v_slab = jnp.asarray(np.stack([
        padv(p["b_in"]),
        padv(p["g_in"], 1.0),
        padv(p["be_in"]),
        padv(np.concatenate([np.asarray(p["b_b1"]), np.asarray(p["b_b2"])])),
        padv(np.concatenate([np.asarray(p["g_b1"]), np.asarray(p["g_b2"])]), 1.0),
        padv(np.concatenate([np.asarray(p["be_b1"]), np.asarray(p["be_b2"])])),
        padv(np.concatenate([np.asarray(p["bo1"]), np.asarray(p["bo2"])])),
    ], axis=0))
    return w_slab, v_slab


# ---------------------------------------------------------------------------
# Pure-JAX reference mirroring the PyTorch module structure.
# ---------------------------------------------------------------------------
def reference_forward(x, p):
    def bn(h, g, be):
        m = jnp.mean(h, axis=0, keepdims=True)
        v = jnp.mean((h - m) ** 2, axis=0, keepdims=True)
        return (h - m) / jnp.sqrt(v + EPS) * g + be

    h = bn(jnp.maximum(x @ p["w_in"] + p["b_in"], 0.0), p["g_in"], p["be_in"])
    h1 = bn(jnp.maximum(h @ p["w_b1"] + p["b_b1"], 0.0), p["g_b1"], p["be_b1"])
    y1 = h1 @ p["w_o1"] + p["bo1"]
    h2 = bn(jnp.maximum(h @ p["w_b2"] + p["b_b2"], 0.0), p["g_b2"], p["be_b2"])
    y2 = h2 @ p["w_o2"] + p["bo2"]
    return y1, y2


if __name__ == "__main__":
    # Config: net.out_size=32, net_arch = ([64], [64, 32], [64, 16]),
    #         last=True, bn=True, drop=False.
    B, D_IN = 8, 32
    H_IN, H1, H2, O1, O2 = 64, 64, 64, 32, 16

    key = jax.random.PRNGKey(0)
    kx, kp = jax.random.split(key)
    x = jax.random.normal(kx, (B, D_IN), jnp.float32)

    raw = make_raw_params(kp, D_IN, H_IN, H1, H2, O1, O2)
    w_slab, v_slab = pack_params(raw, H1, H2, O1, O2)

    y1, y2 = muxout_forward(x, w_slab, v_slab, O1, O2)
    jax.block_until_ready((y1, y2))

    r1, r2 = reference_forward(x, raw)
    np.testing.assert_allclose(np.asarray(y1), np.asarray(r1), rtol=5e-4, atol=5e-4)
    np.testing.assert_allclose(np.asarray(y2), np.asarray(r2), rtol=5e-4, atol=5e-4)

    print("KERNEL_OK")
</pallas_src>

<mosaic_0001>
module attributes {stable_mosaic.version = 11 : i64} {
  func.func @muxout_kernel(%arg0: memref<8x128xf32, #tpu.memory_space<vmem>>, %arg1: memref<3x128x128xf32, #tpu.memory_space<vmem>>, %arg2: memref<7x128xf32, #tpu.memory_space<vmem>>, %arg3: memref<8x128xf32, #tpu.memory_space<vmem>>) attributes {dimension_semantics = [], scalar_prefetch = 0 : i64, scratch_operands = 0 : i64, tpu.core_type = #tpu.core_type<tc>} {
    %c0 = arith.constant 0 : index
    %c0_0 = arith.constant 0 : index
    %0 = vector.load %arg0[%c0, %c0_0] : memref<8x128xf32, #tpu.memory_space<vmem>>, vector<8x128xf32>
    %c0_1 = arith.constant 0 : index
    %c0_2 = arith.constant 0 : index
    %1 = vector.load %arg2[%c0_1, %c0_2] : memref<7x128xf32, #tpu.memory_space<vmem>>, vector<7x128xf32>
    %c0_3 = arith.constant 0 : index
    %c0_4 = arith.constant 0 : index
    %c0_5 = arith.constant 0 : index
    %2 = vector.load %arg1[%c0_3, %c0_4, %c0_5] : memref<3x128x128xf32, #tpu.memory_space<vmem>>, vector<1x128x128xf32>
    %3 = vector.shape_cast %2 : vector<1x128x128xf32> to vector<128x128xf32>
    %cst = arith.constant dense<0.000000e+00> : vector<8x128xf32>
    %4 = tpu.matmul %0, %3, %cst {dimension_numbers = #tpu.dot_dimension_numbers<[1], [0], [0], [1], [0, 0, 1, 1], [], []>} : vector<8x128xf32>, vector<128x128xf32>, vector<8x128xf32> -> vector<8x128xf32>
    %5 = vector.extract_strided_slice %1 {offsets = [0, 0], sizes = [1, 128], strides = [1, 1]} : vector<7x128xf32> to vector<1x128xf32>
    %6 = vector.broadcast %5 : vector<1x128xf32> to vector<8x128xf32>
    %7 = arith.addf %4, %6 : vector<8x128xf32>
    %cst_6 = arith.constant 0.000000e+00 : f32
    %8 = vector.broadcast %cst_6 : f32 to vector<8x128xf32>
    %9 = arith.maximumf %7, %8 : vector<8x128xf32>
    %10 = vector.extract_strided_slice %1 {offsets = [1, 0], sizes = [1, 128], strides = [1, 1]} : vector<7x128xf32> to vector<1x128xf32>
    %11 = vector.extract_strided_slice %1 {offsets = [2, 0], sizes = [1, 128], strides = [1, 1]} : vector<7x128xf32> to vector<1x128xf32>
    %cst_7 = arith.constant dense<0.000000e+00> : vector<128xf32>
    %12 = vector.multi_reduction <add>, %9, %cst_7 [0] : vector<8x128xf32> to vector<128xf32>
    %13 = vector.shape_cast %12 : vector<128xf32> to vector<1x128xf32>
    %14 = arith.mulf %9, %9 : vector<8x128xf32>
    %cst_8 = arith.constant dense<0.000000e+00> : vector<128xf32>
    %15 = vector.multi_reduction <add>, %14, %cst_8 [0] : vector<8x128xf32> to vector<128xf32>
    %16 = vector.shape_cast %15 : vector<128xf32> to vector<1x128xf32>
    %cst_9 = arith.constant 1.250000e-01 : f32
    %17 = vector.broadcast %cst_9 : f32 to vector<1x128xf32>
    %18 = arith.mulf %13, %17 : vector<1x128xf32>
    %cst_10 = arith.constant 1.250000e-01 : f32
    %19 = vector.broadcast %cst_10 : f32 to vector<1x128xf32>
    %20 = arith.mulf %16, %19 : vector<1x128xf32>
    %21 = arith.mulf %18, %18 : vector<1x128xf32>
    %22 = arith.subf %20, %21 : vector<1x128xf32>
    %cst_11 = arith.constant 9.99999974E-6 : f32
    %23 = vector.broadcast %cst_11 : f32 to vector<1x128xf32>
    %24 = arith.addf %22, %23 : vector<1x128xf32>
    %25 = math.rsqrt %24 : vector<1x128xf32>
    %26 = arith.mulf %10, %25 : vector<1x128xf32>
    %27 = arith.mulf %18, %26 : vector<1x128xf32>
    %28 = arith.subf %11, %27 : vector<1x128xf32>
    %29 = vector.broadcast %26 : vector<1x128xf32> to vector<8x128xf32>
    %30 = arith.mulf %9, %29 : vector<8x128xf32>
    %31 = vector.broadcast %28 : vector<1x128xf32> to vector<8x128xf32>
    %32 = arith.addf %30, %31 : vector<8x128xf32>
    %c1 = arith.constant 1 : index
    %c0_12 = arith.constant 0 : index
    %c0_13 = arith.constant 0 : index
    %33 = vector.load %arg1[%c1, %c0_12, %c0_13] : memref<3x128x128xf32, #tpu.memory_space<vmem>>, vector<1x128x128xf32>
    %34 = vector.shape_cast %33 : vector<1x128x128xf32> to vector<128x128xf32>
    %cst_14 = arith.constant dense<0.000000e+00> : vector<8x128xf32>
    %35 = tpu.matmul %32, %34, %cst_14 {dimension_numbers = #tpu.dot_dimension_numbers<[1], [0], [0], [1], [0, 0, 1, 1], [], []>} : vector<8x128xf32>, vector<128x128xf32>, vector<8x128xf32> -> vector<8x128xf32>
    %36 = vector.extract_strided_slice %1 {offsets = [3, 0], sizes = [1, 128], strides = [1, 1]} : vector<7x128xf32> to vector<1x128xf32>
    %37 = vector.broadcast %36 : vector<1x128xf32> to vector<8x128xf32>
    %38 = arith.addf %35, %37 : vector<8x128xf32>
    %cst_15 = arith.constant 0.000000e+00 : f32
    %39 = vector.broadcast %cst_15 : f32 to vector<8x128xf32>
    %40 = arith.maximumf %38, %39 : vector<8x128xf32>
    %41 = vector.extract_strided_slice %1 {offsets = [4, 0], sizes = [1, 128], strides = [1, 1]} : vector<7x128xf32> to vector<1x128xf32>
    %42 = vector.extract_strided_slice %1 {offsets = [5, 0], sizes = [1, 128], strides = [1, 1]} : vector<7x128xf32> to vector<1x128xf32>
    %cst_16 = arith.constant dense<0.000000e+00> : vector<128xf32>
    %43 = vector.multi_reduction <add>, %40, %cst_16 [0] : vector<8x128xf32> to vector<128xf32>
    %44 = vector.shape_cast %43 : vector<128xf32> to vector<1x128xf32>
    %45 = arith.mulf %40, %40 : vector<8x128xf32>
    %cst_17 = arith.constant dense<0.000000e+00> : vector<128xf32>
    %46 = vector.multi_reduction <add>, %45, %cst_17 [0] : vector<8x128xf32> to vector<128xf32>
    %47 = vector.shape_cast %46 : vector<128xf32> to vector<1x128xf32>
    %cst_18 = arith.constant 1.250000e-01 : f32
    %48 = vector.broadcast %cst_18 : f32 to vector<1x128xf32>
    %49 = arith.mulf %44, %48 : vector<1x128xf32>
    %cst_19 = arith.constant 1.250000e-01 : f32
    %50 = vector.broadcast %cst_19 : f32 to vector<1x128xf32>
    %51 = arith.mulf %47, %50 : vector<1x128xf32>
    %52 = arith.mulf %49, %49 : vector<1x128xf32>
    %53 = arith.subf %51, %52 : vector<1x128xf32>
    %cst_20 = arith.constant 9.99999974E-6 : f32
    %54 = vector.broadcast %cst_20 : f32 to vector<1x128xf32>
    %55 = arith.addf %53, %54 : vector<1x128xf32>
    %56 = math.rsqrt %55 : vector<1x128xf32>
    %57 = arith.mulf %41, %56 : vector<1x128xf32>
    %58 = arith.mulf %49, %57 : vector<1x128xf32>
    %59 = arith.subf %42, %58 : vector<1x128xf32>
    %60 = vector.broadcast %57 : vector<1x128xf32> to vector<8x128xf32>
    %61 = arith.mulf %40, %60 : vector<8x128xf32>
    %62 = vector.broadcast %59 : vector<1x128xf32> to vector<8x128xf32>
    %63 = arith.addf %61, %62 : vector<8x128xf32>
    %c2 = arith.constant 2 : index
    %c0_21 = arith.constant 0 : index
    %c0_22 = arith.constant 0 : index
    %64 = vector.load %arg1[%c2, %c0_21, %c0_22] : memref<3x128x128xf32, #tpu.memory_space<vmem>>, vector<1x128x128xf32>
    %65 = vector.shape_cast %64 : vector<1x128x128xf32> to vector<128x128xf32>
    %cst_23 = arith.constant dense<0.000000e+00> : vector<8x128xf32>
    %66 = tpu.matmul %63, %65, %cst_23 {dimension_numbers = #tpu.dot_dimension_numbers<[1], [0], [0], [1], [0, 0, 1, 1], [], []>} : vector<8x128xf32>, vector<128x128xf32>, vector<8x128xf32> -> vector<8x128xf32>
    %67 = vector.extract_strided_slice %1 {offsets = [6, 0], sizes = [1, 128], strides = [1, 1]} : vector<7x128xf32> to vector<1x128xf32>
    %68 = vector.broadcast %67 : vector<1x128xf32> to vector<8x128xf32>
    %69 = arith.addf %66, %68 : vector<8x128xf32>
    %c0_24 = arith.constant 0 : index
    %c0_25 = arith.constant 0 : index
    %70 = vector.load %arg3[%c0_24, %c0_25] : memref<8x128xf32, #tpu.memory_space<vmem>>, vector<8x128xf32>
    tpu.vector_store %arg3[%c0_24, %c0_25], %69 {strides = array<i32>} : memref<8x128xf32, #tpu.memory_space<vmem>>, vector<8x128xf32>,
    return
  }
}

</mosaic_0001>

<llo_original>
// kernel: tpu_custom_call.1
$region0: #{tpu_custom_call.1}
  #allocation0 [shape = 'u32[]', space=smem, size = 0x4, offset = 0x4, fixed_abs, tag = 'smem constant byte address 0x4 - core index']
  #allocation1 [shape = 'u32[144,128]{1,0:T(1,128)}', space=vmem, size = 0x12000, scoped, tag = 'internal scratch']
  %s0 = inlined_call_operand.hbm [shape: f32[8,128], index: 0, kind: input, shape index: {}]
  %s1 = inlined_call_operand.hbm [shape: f32[3,128,128], index: 1, kind: input, shape index: {}]
  %s2 = inlined_call_operand.hbm [shape: f32[7,128], index: 2, kind: input, shape index: {}]
  %s3 = inlined_call_operand.hbm [shape: f32[8,128], index: 3, kind: output, shape index: {}]
  %s4 = sld [smem:[#allocation0]]
  $region34: #{tpu_custom_call.1} parent=0
    _
  %s6 = ssub.s32 1, %s4
  %s7 = scalar_select 0, %s6, %s4
  $region1: #{tpu_custom_call.1} parent=0
    #allocation2 [shape = 'u8[4096]{0}', space=vmem, size = 0x1000, scoped, tag = 'input window, operand 0, single buffered']
    #allocation3 [shape = 's32[1]{0}', space=sflag, size = 0x4, scoped, tag = 'scoped memory for tpu_custom_call.1']
    #allocation4 [shape = 's32[1]{0}', space=sflag, size = 0x4, scoped, tag = 'scoped memory for tpu_custom_call.1']
    #allocation5 [shape = 'u8[196608]{0}', space=vmem, size = 0x30000, scoped, tag = 'input window, operand 1, single buffered']
    #allocation6 [shape = 's32[1]{0}', space=sflag, size = 0x4, scoped, tag = 'scoped memory for tpu_custom_call.1']
    #allocation7 [shape = 'u8[4096]{0}', space=vmem, size = 0x1000, scoped, tag = 'input window, operand 2, single buffered']
    #allocation8 [shape = 'u8[4096]{0}', space=vmem, size = 0x1000, scoped, tag = 'output window, operand 0, single buffered']
    %8 = vsyncpa [#allocation3], 0
    %9 = vsyncpa [#allocation6], 0
    %10 = vsyncpa [#allocation4], 0
    // Predicated region
    $region2: #{tpu_custom_call.1} parent=1 // pred_check
      _
    $region3: #{tpu_custom_call.1} parent=1 // pred_check_branch
      %12 = sbr.rel (0) target = $region5
    $region4: #{tpu_custom_call.1} parent=1 // pred_region
      %s14 = ssub.s32 128, 128
      %15 = vsyncadd [#allocation3], %s14
      %s17 = sshll.u32 [#allocation2], 4
      %s18 = int_to_ptr.vmem [resolvable:$true] %s17
      %20 = dma.hbm_to_vmem [thread:$0]  %s0, 128, %s18, [#allocation3]
    $region5: #{tpu_custom_call.1} parent=1 // pred_fallthru
      _
    // Predicated region
    $region6: #{tpu_custom_call.1} parent=1 // pred_check
      _
    $region7: #{tpu_custom_call.1} parent=1 // pred_check_branch
      %22 = sbr.rel (0) target = $region9
    $region8: #{tpu_custom_call.1} parent=1 // pred_region
      %s24 = ssub.s32 6144, 6144
      %25 = vsyncadd [#allocation6], %s24
      %s26 = sshll.u32 [#allocation5], 4
      %s27 = int_to_ptr.vmem [resolvable:$true] %s26
      %32 = dma.hbm_to_vmem [thread:$0]  %s1, 6144, %s27, [#allocation6], 128, 128, 8
    $region9: #{tpu_custom_call.1} parent=1 // pred_fallthru
      _
    // Predicated region
    $region10: #{tpu_custom_call.1} parent=1 // pred_check
      _
    $region11: #{tpu_custom_call.1} parent=1 // pred_check_branch
      %34 = sbr.rel (0) target = $region13
    $region12: #{tpu_custom_call.1} parent=1 // pred_region
      %s36 = ssub.s32 128, 128
      %37 = vsyncadd [#allocation6], %s36
      %s39 = sshll.u32 [#allocation7], 4
      %s40 = int_to_ptr.vmem [resolvable:$true] %s39
      %42 = dma.hbm_to_vmem [thread:$0]  %s2, 128, %s40, [#allocation6]
    $region13: #{tpu_custom_call.1} parent=1 // pred_fallthru
      _
    // Predicated region
    $region14: #{tpu_custom_call.1} parent=1 // pred_check
      _
    $region15: #{tpu_custom_call.1} parent=1 // pred_check_branch
      %44 = sbr.rel (0) target = $region17
    $region16: #{tpu_custom_call.1} parent=1 // pred_region
      %45 = dma.done [#allocation3], 128
    $region17: #{tpu_custom_call.1} parent=1 // pred_fallthru
      _
    // Predicated region
    $region18: #{tpu_custom_call.1} parent=1 // pred_check
      _
    $region19: #{tpu_custom_call.1} parent=1 // pred_check_branch
      %47 = sbr.rel (0) target = $region21
    $region20: #{tpu_custom_call.1} parent=1 // pred_region
      %48 = dma.done [#allocation6], 6144
    $region21: #{tpu_custom_call.1} parent=1 // pred_fallthru
      _
    // Predicated region
    $region22: #{tpu_custom_call.1} parent=1 // pred_check
      _
    $region23: #{tpu_custom_call.1} parent=1 // pred_check_branch
      %50 = sbr.rel (0) target = $region25
    $region24: #{tpu_custom_call.1} parent=1 // pred_region
      %51 = dma.done [#allocation6], 128
    $region25: #{tpu_custom_call.1} parent=1 // pred_fallthru
      _
    %v52 = vld [vmem:[#allocation2] sm:$0xff]
    %v53 = vld [vmem:[#allocation7] sm:$0x7f]
    %v54 = vld [vmem:[#allocation5] sm:$0xff]
    %v55 = vld [vmem:[#allocation5 + $0x8] sm:$0xff]
    %v56 = vld [vmem:[#allocation5 + $0x10] sm:$0xff]
    %v57 = vld [vmem:[#allocation5 + $0x18] sm:$0xff]
    %v58 = vld [vmem:[#allocation5 + $0x20] sm:$0xff]
    %v59 = vld [vmem:[#allocation5 + $0x28] sm:$0xff]
    %v60 = vld [vmem:[#allocation5 + $0x30] sm:$0xff]
    %v61 = vld [vmem:[#allocation5 + $0x38] sm:$0xff]
    %v62 = vld [vmem:[#allocation5 + $0x40] sm:$0xff]
    %v63 = vld [vmem:[#allocation5 + $0x48] sm:$0xff]
    %v64 = vld [vmem:[#allocation5 + $0x50] sm:$0xff]
    %v65 = vld [vmem:[#allocation5 + $0x58] sm:$0xff]
    %v66 = vld [vmem:[#allocation5 + $0x60] sm:$0xff]
    %v67 = vld [vmem:[#allocation5 + $0x68] sm:$0xff]
    %v68 = vld [vmem:[#allocation5 + $0x70] sm:$0xff]
    %v69 = vld [vmem:[#allocation5 + $0x78] sm:$0xff]
    %v70 = vlaneseq
    %v71 = vshrl.u32 %v70, 7
    %v72 = vsub.s32 0, %v71
    %v73 = vrot.slane %v53, %v72
    %74 = vmatprep.subr.mxu0 0.0
    %75 = vmatpush1.msra.mxu0 %v54
    %76 = vmatprep.subr.mxu0 0.0
    %77 = vmatpush1.msra.mxu0 %v55
    %78 = vmatprep.subr.mxu0 0.0
    %79 = vmatpush1.msra.mxu0 %v56
    %80 = vmatprep.subr.mxu0 0.0
    %81 = vmatpush1.msra.mxu0 %v57
    %82 = vmatprep.subr.mxu0 0.0
    %83 = vmatpush1.msra.mxu0 %v58
    %84 = vmatprep.subr.mxu0 0.0
    %85 = vmatpush1.msra.mxu0 %v59
    %86 = vmatprep.subr.mxu0 0.0
    %87 = vmatpush1.msra.mxu0 %v60
    %88 = vmatprep.subr.mxu0 0.0
    %89 = vmatpush1.msra.mxu0 %v61
    %90 = vmatprep.subr.mxu0 0.0
    %91 = vmatpush1.msra.mxu0 %v62
    %92 = vmatprep.subr.mxu0 0.0
    %93 = vmatpush1.msra.mxu0 %v63
    %94 = vmatprep.subr.mxu0 0.0
    %95 = vmatpush1.msra.mxu0 %v64
    %96 = vmatprep.subr.mxu0 0.0
    %97 = vmatpush1.msra.mxu0 %v65
    %98 = vmatprep.subr.mxu0 0.0
    %99 = vmatpush1.msra.mxu0 %v66
    %100 = vmatprep.subr.mxu0 0.0
    %101 = vmatpush1.msra.mxu0 %v67
    %102 = vmatprep.subr.mxu0 0.0
    %103 = vmatpush1.msra.mxu0 %v68
    %104 = vmatprep.subr.mxu0 0.0
    %105 = vmatpush1.msra.mxu0 %v69
    %106 = vmatprep.subr.mxu0 0.0
    %107 = vmatpush1.msra.mxu0 0.0
    %108 = vmatprep.subr.mxu0 0.0
    %109 = vmatpush1.msra.mxu0 0.0
    %110 = vmatprep.subr.mxu0 0.0
    %111 = vmatpush1.msra.mxu0 0.0
    %112 = vmatprep.subr.mxu0 0.0
    %113 = vmatpush1.msra.mxu0 0.0
    %114 = vmatprep.subr.mxu0 0.0
    %115 = vmatpush1.msra.mxu0 0.0
    %116 = vmatprep.subr.mxu0 0.0
    %117 = vmatpush1.msra.mxu0 0.0
    %118 = vmatprep.subr.mxu0 0.0
    %119 = vmatpush1.msra.mxu0 0.0
    %120 = vmatprep.subr.mxu0 0.0
    %121 = vmatpush1.msra.mxu0 0.0
    %122 = vmatprep.subr.mxu0 0.0
    %123 = vmatpush1.msra.mxu0 0.0
    %124 = vmatprep.subr.mxu0 0.0
    %125 = vmatpush1.msra.mxu0 0.0
    %126 = vmatprep.subr.mxu0 0.0
    %127 = vmatpush1.msra.mxu0 0.0
    %128 = vmatprep.subr.mxu0 0.0
    %129 = vmatpush1.msra.mxu0 0.0
    %130 = vmatprep.subr.mxu0 0.0
    %131 = vmatpush1.msra.mxu0 0.0
    %132 = vmatprep.subr.mxu0 0.0
    %133 = vmatpush1.msra.mxu0 0.0
    %134 = vmatprep.subr.mxu0 0.0
    %135 = vmatpush1.msra.mxu0 0.0
    %136 = vmatprep.subr.mxu0 0.0
    %137 = vmatpush1.msra.mxu0 0.0
    %138 = vmatprep.mubr.f32.mxu0 0.0
    %139 = vmatmul.mubr.f32.gmra.mrb[0].mxu0 %v52
    %v140 = vpop.f32.mrb[0].mxu0
    %v141 = vadd.f32 %v73, %v140
    %v142 = vpop.f32.mrb[0].mxu0
    %143 = vdwg.mxu0
    %v144 = vmax.f32 %v141, 0.0
    %v145 = vrot.slane %v144, 4
    %v146 = vadd.f32 %v144, %v145
    %v147 = vrot.slane %v146, 2
    %v148 = vadd.f32 %v146, %v147
    %v149 = vrot.slane %v148, 1
    %v150 = vadd.f32 %v148, %v149
    %v151 = vmul.f32 %v144, %v144
    %v152 = vrot.slane %v151, 4
    %v153 = vadd.f32 %v151, %v152
    %v154 = vrot.slane %v153, 2
    %v155 = vadd.f32 %v153, %v154
    %v156 = vrot.slane %v155, 1
    %v157 = vadd.f32 %v155, %v156
    %v158 = vmul.f32 %v150, 0.125
    %v159 = vmul.f32 %v157, 0.125
    %v160 = vmul.f32 %v158, %v158
    %v161 = vsub.f32 %v159, %v160
    %v162 = vadd.f32 %v161, 1e-05
    %v163 = vrsqrt.pop %v162
    %v164 = vmul.f32 %v53, %v163
    %v165 = vmul.f32 %v158, %v164
    %v167 = vrot.slane %v165, 7
    %v169 = vsub.f32 %v53, %v167
    %v170 = vlaneseq
    %v171 = vshrl.u32 %v170, 7
    %v172 = vsub.s32 1, %v171
    %v173 = vrot.slane %v164, %v172
    %v174 = vmul.f32 %v144, %v173
    %v175 = vlaneseq
    %v176 = vshrl.u32 %v175, 7
    %v177 = vsub.s32 2, %v176
    %v178 = vrot.slane %v169, %v177
    %v179 = vadd.f32 %v174, %v178
    %s180 = scalar_lea.vmem [#allocation5], 128
    %v181 = vld [vmem:[%s180] sm:$0xff]
    %v182 = vld [vmem:[%s180 + $0x8] sm:$0xff]
    %v183 = vld [vmem:[%s180 + $0x10] sm:$0xff]
    %v184 = vld [vmem:[%s180 + $0x18] sm:$0xff]
    %v185 = vld [vmem:[%s180 + $0x20] sm:$0xff]
    %v186 = vld [vmem:[%s180 + $0x28] sm:$0xff]
    %v187 = vld [vmem:[%s180 + $0x30] sm:$0xff]
    %v188 = vld [vmem:[%s180 + $0x38] sm:$0xff]
    %v189 = vld [vmem:[%s180 + $0x40] sm:$0xff]
    %v190 = vld [vmem:[%s180 + $0x48] sm:$0xff]
    %v191 = vld [vmem:[%s180 + $0x50] sm:$0xff]
    %v192 = vld [vmem:[%s180 + $0x58] sm:$0xff]
    %v193 = vld [vmem:[%s180 + $0x60] sm:$0xff]
    %v194 = vld [vmem:[%s180 + $0x68] sm:$0xff]
    %v195 = vld [vmem:[%s180 + $0x70] sm:$0xff]
    %v196 = vld [vmem:[%s180 + $0x78] sm:$0xff]
    %v197 = vlaneseq
    %v198 = vshrl.u32 %v197, 7
    %v199 = vsub.s32 3, %v198
    %v200 = vrot.slane %v53, %v199
    %201 = vmatprep.subr.mxu0 0.0
    %202 = vmatpush1.msra.mxu0 %v181
    %203 = vmatprep.subr.mxu0 0.0
    %204 = vmatpush1.msra.mxu0 %v182
    %205 = vmatprep.subr.mxu0 0.0
    %206 = vmatpush1.msra.mxu0 %v183
    %207 = vmatprep.subr.mxu0 0.0
    %208 = vmatpush1.msra.mxu0 %v184
    %209 = vmatprep.subr.mxu0 0.0
    %210 = vmatpush1.msra.mxu0 %v185
    %211 = vmatprep.subr.mxu0 0.0
    %212 = vmatpush1.msra.mxu0 %v186
    %213 = vmatprep.subr.mxu0 0.0
    %214 = vmatpush1.msra.mxu0 %v187
    %215 = vmatprep.subr.mxu0 0.0
    %216 = vmatpush1.msra.mxu0 %v188
    %217 = vmatprep.subr.mxu0 0.0
    %218 = vmatpush1.msra.mxu0 %v189
    %219 = vmatprep.subr.mxu0 0.0
    %220 = vmatpush1.msra.mxu0 %v190
    %221 = vmatprep.subr.mxu0 0.0
    %222 = vmatpush1.msra.mxu0 %v191
    %223 = vmatprep.subr.mxu0 0.0
    %224 = vmatpush1.msra.mxu0 %v192
    %225 = vmatprep.subr.mxu0 0.0
    %226 = vmatpush1.msra.mxu0 %v193
    %227 = vmatprep.subr.mxu0 0.0
    %228 = vmatpush1.msra.mxu0 %v194
    %229 = vmatprep.subr.mxu0 0.0
    %230 = vmatpush1.msra.mxu0 %v195
    %231 = vmatprep.subr.mxu0 0.0
    %232 = vmatpush1.msra.mxu0 %v196
    %233 = vmatprep.subr.mxu0 0.0
    %234 = vmatpush1.msra.mxu0 0.0
    %235 = vmatprep.subr.mxu0 0.0
    %236 = vmatpush1.msra.mxu0 0.0
    %237 = vmatprep.subr.mxu0 0.0
    %238 = vmatpush1.msra.mxu0 0.0
    %239 = vmatprep.subr.mxu0 0.0
    %240 = vmatpush1.msra.mxu0 0.0
    %241 = vmatprep.subr.mxu0 0.0
    %242 = vmatpush1.msra.mxu0 0.0
    %243 = vmatprep.subr.mxu0 0.0
    %244 = vmatpush1.msra.mxu0 0.0
    %245 = vmatprep.subr.mxu0 0.0
    %246 = vmatpush1.msra.mxu0 0.0
    %247 = vmatprep.subr.mxu0 0.0
    %248 = vmatpush1.msra.mxu0 0.0
    %249 = vmatprep.subr.mxu0 0.0
    %250 = vmatpush1.msra.mxu0 0.0
    %251 = vmatprep.subr.mxu0 0.0
    %252 = vmatpush1.msra.mxu0 0.0
    %253 = vmatprep.subr.mxu0 0.0
    %254 = vmatpush1.msra.mxu0 0.0
    %255 = vmatprep.subr.mxu0 0.0
    %256 = vmatpush1.msra.mxu0 0.0
    %257 = vmatprep.subr.mxu0 0.0
    %258 = vmatpush1.msra.mxu0 0.0
    %259 = vmatprep.subr.mxu0 0.0
    %260 = vmatpush1.msra.mxu0 0.0
    %261 = vmatprep.subr.mxu0 0.0
    %262 = vmatpush1.msra.mxu0 0.0
    %263 = vmatprep.subr.mxu0 0.0
    %264 = vmatpush1.msra.mxu0 0.0
    %265 = vmatprep.mubr.f32.mxu0 0.0
    %266 = vmatmul.mubr.f32.gmra.mrb[0].mxu0 %v179
    %v267 = vpop.f32.mrb[0].mxu0
    %v268 = vadd.f32 %v200, %v267
    %v269 = vpop.f32.mrb[0].mxu0
    %270 = vdwg.mxu0
    %v271 = vmax.f32 %v268, 0.0
    %v272 = vrot.slane %v271, 4
    %v273 = vadd.f32 %v271, %v272
    %v274 = vrot.slane %v273, 2
    %v275 = vadd.f32 %v273, %v274
    %v276 = vrot.slane %v275, 1
    %v277 = vadd.f32 %v275, %v276
    %v278 = vmul.f32 %v271, %v271
    %v279 = vrot.slane %v278, 4
    %v280 = vadd.f32 %v278, %v279
    %v281 = vrot.slane %v280, 2
    %v282 = vadd.f32 %v280, %v281
    %v283 = vrot.slane %v282, 1
    %v284 = vadd.f32 %v282, %v283
    %v285 = vmul.f32 %v277, 0.125
    %v286 = vmul.f32 %v284, 0.125
    %v287 = vmul.f32 %v285, %v285
    %v288 = vsub.f32 %v286, %v287
    %v289 = vadd.f32 %v288, 1e-05
    %v290 = vrsqrt.pop %v289
    %v291 = vmul.f32 %v53, %v290
    %v292 = vmul.f32 %v285, %v291
    %v294 = vrot.slane %v292, 7
    %v296 = vsub.f32 %v53, %v294
    %v297 = vlaneseq
    %v298 = vshrl.u32 %v297, 7
    %v299 = vsub.s32 4, %v298
    %v300 = vrot.slane %v291, %v299
    %v301 = vmul.f32 %v271, %v300
    %v302 = vlaneseq
    %v303 = vshrl.u32 %v302, 7
    %v304 = vsub.s32 5, %v303
    %v305 = vrot.slane %v296, %v304
    %v306 = vadd.f32 %v301, %v305
    %s307 = scalar_lea.vmem [#allocation5], 256
    %v308 = vld [vmem:[%s307] sm:$0xff]
    %v309 = vld [vmem:[%s307 + $0x8] sm:$0xff]
    %v310 = vld [vmem:[%s307 + $0x10] sm:$0xff]
    %v311 = vld [vmem:[%s307 + $0x18] sm:$0xff]
    %v312 = vld [vmem:[%s307 + $0x20] sm:$0xff]
    %v313 = vld [vmem:[%s307 + $0x28] sm:$0xff]
    %v314 = vld [vmem:[%s307 + $0x30] sm:$0xff]
    %v315 = vld [vmem:[%s307 + $0x38] sm:$0xff]
    %v316 = vld [vmem:[%s307 + $0x40] sm:$0xff]
    %v317 = vld [vmem:[%s307 + $0x48] sm:$0xff]
    %v318 = vld [vmem:[%s307 + $0x50] sm:$0xff]
    %v319 = vld [vmem:[%s307 + $0x58] sm:$0xff]
    %v320 = vld [vmem:[%s307 + $0x60] sm:$0xff]
    %v321 = vld [vmem:[%s307 + $0x68] sm:$0xff]
    %v322 = vld [vmem:[%s307 + $0x70] sm:$0xff]
    %v323 = vld [vmem:[%s307 + $0x78] sm:$0xff]
    %v324 = vlaneseq
    %v325 = vshrl.u32 %v324, 7
    %v326 = vsub.s32 6, %v325
    %v327 = vrot.slane %v53, %v326
    %328 = vmatprep.subr.mxu0 0.0
    %329 = vmatpush1.msra.mxu0 %v308
    %330 = vmatprep.subr.mxu0 0.0
    %331 = vmatpush1.msra.mxu0 %v309
    %332 = vmatprep.subr.mxu0 0.0
    %333 = vmatpush1.msra.mxu0 %v310
    %334 = vmatprep.subr.mxu0 0.0
    %335 = vmatpush1.msra.mxu0 %v311
    %336 = vmatprep.subr.mxu0 0.0
    %337 = vmatpush1.msra.mxu0 %v312
    %338 = vmatprep.subr.mxu0 0.0
    %339 = vmatpush1.msra.mxu0 %v313
    %340 = vmatprep.subr.mxu0 0.0
    %341 = vmatpush1.msra.mxu0 %v314
    %342 = vmatprep.subr.mxu0 0.0
    %343 = vmatpush1.msra.mxu0 %v315
    %344 = vmatprep.subr.mxu0 0.0
    %345 = vmatpush1.msra.mxu0 %v316
    %346 = vmatprep.subr.mxu0 0.0
    %347 = vmatpush1.msra.mxu0 %v317
    %348 = vmatprep.subr.mxu0 0.0
    %349 = vmatpush1.msra.mxu0 %v318
    %350 = vmatprep.subr.mxu0 0.0
    %351 = vmatpush1.msra.mxu0 %v319
    %352 = vmatprep.subr.mxu0 0.0
    %353 = vmatpush1.msra.mxu0 %v320
    %354 = vmatprep.subr.mxu0 0.0
    %355 = vmatpush1.msra.mxu0 %v321
    %356 = vmatprep.subr.mxu0 0.0
    %357 = vmatpush1.msra.mxu0 %v322
    %358 = vmatprep.subr.mxu0 0.0
    %359 = vmatpush1.msra.mxu0 %v323
    %360 = vmatprep.subr.mxu0 0.0
    %361 = vmatpush1.msra.mxu0 0.0
    %362 = vmatprep.subr.mxu0 0.0
    %363 = vmatpush1.msra.mxu0 0.0
    %364 = vmatprep.subr.mxu0 0.0
    %365 = vmatpush1.msra.mxu0 0.0
    %366 = vmatprep.subr.mxu0 0.0
    %367 = vmatpush1.msra.mxu0 0.0
    %368 = vmatprep.subr.mxu0 0.0
    %369 = vmatpush1.msra.mxu0 0.0
    %370 = vmatprep.subr.mxu0 0.0
    %371 = vmatpush1.msra.mxu0 0.0
    %372 = vmatprep.subr.mxu0 0.0
    %373 = vmatpush1.msra.mxu0 0.0
    %374 = vmatprep.subr.mxu0 0.0
    %375 = vmatpush1.msra.mxu0 0.0
    %376 = vmatprep.subr.mxu0 0.0
    %377 = vmatpush1.msra.mxu0 0.0
    %378 = vmatprep.subr.mxu0 0.0
    %379 = vmatpush1.msra.mxu0 0.0
    %380 = vmatprep.subr.mxu0 0.0
    %381 = vmatpush1.msra.mxu0 0.0
    %382 = vmatprep.subr.mxu0 0.0
    %383 = vmatpush1.msra.mxu0 0.0
    %384 = vmatprep.subr.mxu0 0.0
    %385 = vmatpush1.msra.mxu0 0.0
    %386 = vmatprep.subr.mxu0 0.0
    %387 = vmatpush1.msra.mxu0 0.0
    %388 = vmatprep.subr.mxu0 0.0
    %389 = vmatpush1.msra.mxu0 0.0
    %390 = vmatprep.subr.mxu0 0.0
    %391 = vmatpush1.msra.mxu0 0.0
    %392 = vmatprep.mubr.f32.mxu0 0.0
    %393 = vmatmul.mubr.f32.gmra.mrb[0].mxu0 %v306
    %v394 = vpop.f32.mrb[0].mxu0
    %v395 = vadd.f32 %v327, %v394
    %v396 = vpop.f32.mrb[0].mxu0
    %397 = vdwg.mxu0
    %398 = vst [vmem:[#allocation8] sm:$0xff] %v395
    // Predicated region
    $region26: #{tpu_custom_call.1} parent=1 // pred_check
      _
    $region27: #{tpu_custom_call.1} parent=1 // pred_check_branch
      %400 = sbr.rel (0) target = $region29
    $region28: #{tpu_custom_call.1} parent=1 // pred_region
      %s402 = ssub.s32 128, 128
      %403 = vsyncadd [#allocation4], %s402
      %s405 = sshll.u32 [#allocation8], 4
      %s406 = int_to_ptr.vmem [resolvable:$true] %s405
      %408 = dma.vmem_to_hbm [thread:$0]  %s406, 128, %s3, [#allocation4]
    $region29: #{tpu_custom_call.1} parent=1 // pred_fallthru
      _
    // Predicated region
    $region30: #{tpu_custom_call.1} parent=1 // pred_check
      _
    $region31: #{tpu_custom_call.1} parent=1 // pred_check_branch
      %410 = sbr.rel (0) target = $region33
    $region32: #{tpu_custom_call.1} parent=1 // pred_region
      %411 = dma.done [#allocation4], 128
    $region33: #{tpu_custom_call.1} parent=1 // pred_fallthru
      _
    %412 = vsyncpa [#allocation3], 1
    %413 = vsyncpa [#allocation6], 1
    %414 = vsyncpa [#allocation4], 1

</llo_original>
